<compile_context>
chip_gen: v5e
topology: v5e:2x2
jax: 0.10.0
libtpu: 0.0.40
codegen_flags: <defaults>
</compile_context>

<pallas_src>
import functools

import jax
import jax.numpy as jnp
from jax.experimental import pallas as pl
from jax.experimental.pallas import tpu as pltpu


# ---------------------------------------------------------------------------
# Per-generation tiling / VMEM configuration
# ---------------------------------------------------------------------------
def _round_up(x, m):
    return ((x + m - 1) // m) * m


def _device_kind():
    try:
        return jax.devices()[0].device_kind.lower()
    except Exception:
        return ""


_KIND = _device_kind()
_IS_V7 = ("v7" in _KIND) or ("7x" in _KIND)
if _IS_V7:
    # v7x: 64 MiB VMEM/TC but tiles only use a few MiB -> big tiles; 2 TCs want >=2 par tiles.
    _BM_C = (512, 256, 128)
    _BK_C = (1024, 512, 256, 128)
    _VMEM_LIMIT = 48 << 20
    _MIN_PAR_TILES = 2
elif "v6" in _KIND:
    _BM_C = (512, 256, 128)
    _BK_C = (1024, 512, 256, 128)
    _VMEM_LIMIT = 64 << 20
    _MIN_PAR_TILES = 1
else:  # v5e / unknown: DMA-bound -> still want 512-wide tiles to stream a_hat once.
    _BM_C = (512, 256, 128)
    _BK_C = (512, 256, 128)
    _VMEM_LIMIT = 32 << 20
    _MIN_PAR_TILES = 1

_BROW_C = (512, 256, 128)  # pool row-tile candidates
_BF_C = (512, 256, 128)    # pool feature-tile candidates


def _pick_block(dim, candidates, min_tiles=1):
    for c in candidates:
        if dim >= c and dim % c == 0 and dim // c >= min_tiles:
            return c
    for c in candidates:
        if dim >= c and dim % c == 0:
            return c
    return dim


def _pad2(a, r, c):
    return jnp.pad(a, ((0, r - a.shape[0]), (0, c - a.shape[1])))


def _pad1(a, n):
    return jnp.pad(a, (0, n - a.shape[0]))


# ---------------------------------------------------------------------------
# Fused GCN layer kernel: relu((a_hat @ x) @ W + b), one pallas_call per layer
# ---------------------------------------------------------------------------
def _gcn_conv_kernel(nz_ref, a_ref, x_ref, w_ref, b_ref, o_ref, acc_ref):
    i = pl.program_id(0)
    k = pl.program_id(1)
    nk = pl.num_programs(1)

    @pl.when(k == 0)
    def _():
        acc_ref[...] = jnp.zeros_like(acc_ref)

    # Skip all-zero a_hat blocks (block-diagonal adjacency of a batched graph).
    @pl.when(nz_ref[i * nk + k] != 0)
    def _():
        acc_ref[...] += jnp.dot(
            a_ref[...], x_ref[...], preferred_element_type=jnp.float32
        )

    @pl.when(k == nk - 1)
    def _():
        ax = acc_ref[...].astype(jnp.bfloat16)
        out = jnp.dot(ax, w_ref[...], preferred_element_type=jnp.float32) + b_ref[...]
        o_ref[...] = jnp.maximum(out, 0.0).astype(o_ref.dtype)


def compute_block_nz(a_hat, bm, bk):
    """Per-(i,k)-block nonzero flags of a_hat, flattened row-major for SMEM prefetch."""
    m, k = a_hat.shape
    nz = (a_hat.reshape(m // bm, bm, k // bk, bk) != 0).any(axis=(1, 3))
    return nz.astype(jnp.int32).reshape(-1)


def gcn_layer(a_hat, x, w, b, block_nz, bm, bk):
    """GCNConv + ReLU as one fused, tiled, pipelined kernel."""
    n_pad = a_hat.shape[0]
    cin = x.shape[1]
    cout = w.shape[1]
    bias2 = b.reshape(1, cout).astype(jnp.float32)
    grid = (n_pad // bm, n_pad // bk)
    return pl.pallas_call(
        _gcn_conv_kernel,
        out_shape=jax.ShapeDtypeStruct((n_pad, cout), jnp.bfloat16),
        grid_spec=pltpu.PrefetchScalarGridSpec(
            num_scalar_prefetch=1,
            grid=grid,
            in_specs=[
                pl.BlockSpec((bm, bk), lambda i, k, nz: (i, k)),      # a_hat tile
                pl.BlockSpec((bk, cin), lambda i, k, nz: (k, 0)),     # x tile
                pl.BlockSpec((cin, cout), lambda i, k, nz: (0, 0)),   # W, VMEM-resident
                pl.BlockSpec((1, cout), lambda i, k, nz: (0, 0)),     # bias
            ],
            out_specs=pl.BlockSpec((bm, cout), lambda i, k, nz: (i, 0)),
            scratch_shapes=[pltpu.VMEM((bm, cin), jnp.float32)],
        ),
        compiler_params=pltpu.CompilerParams(
            dimension_semantics=("parallel", "arbitrary"),
            vmem_limit_bytes=_VMEM_LIMIT,
        ),
    )(block_nz, a_hat, x, w, bias2)


# ---------------------------------------------------------------------------
# Row-tiled global max pool (offsets scalar-prefetched, bf16 running max in the
# output block, per-graph work gated to overlapping row tiles)
# ---------------------------------------------------------------------------
def _pool_kernel(off_ref, x_ref, o_ref, *, num_graphs, bn_rows):
    n_idx = pl.program_id(1)

    @pl.when(n_idx == 0)
    def _():
        o_ref[...] = jnp.full(o_ref.shape, -jnp.inf, dtype=o_ref.dtype)

    x = x_ref[...]                                             # (bn_rows, bf) bf16
    neg_inf = jnp.array(-jnp.inf, dtype=x.dtype)
    base = n_idx * bn_rows
    row = base + jax.lax.broadcasted_iota(jnp.int32, (bn_rows, 1), 0)

    for g in range(num_graphs):                                # static & small -> unrolled
        lo = off_ref[g]
        hi = off_ref[g + 1]

        @pl.when((hi > base) & (lo < base + bn_rows))          # only overlapping row tiles
        def _(g=g, lo=lo, hi=hi):
            mask = (row >= lo) & (row < hi)                    # excludes padded nodes
            tmax = jnp.max(jnp.where(mask, x, neg_inf), axis=0, keepdims=True)
            o_ref[pl.ds(g, 1), :] = jnp.maximum(o_ref[pl.ds(g, 1), :], tmax)

    @pl.when(n_idx == pl.num_programs(1) - 1)
    def _():
        vals = o_ref[...]
        gi = jax.lax.broadcasted_iota(jnp.int32, vals.shape, 0)
        o_ref[...] = jnp.where(gi < num_graphs, vals, jnp.zeros_like(vals))


def global_max_pool(h, offsets, num_graphs, g_pad):
    n_pad, f_pad = h.shape
    bf = _pick_block(f_pad, _BF_C)
    bn_rows = _pick_block(n_pad, _BROW_C)
    return pl.pallas_call(
        functools.partial(_pool_kernel, num_graphs=num_graphs, bn_rows=bn_rows),
        out_shape=jax.ShapeDtypeStruct((g_pad, f_pad), jnp.bfloat16),
        grid_spec=pltpu.PrefetchScalarGridSpec(
            num_scalar_prefetch=1,
            grid=(f_pad // bf, n_pad // bn_rows),
            in_specs=[pl.BlockSpec((bn_rows, bf), lambda f, n, off: (n, f))],
            out_specs=pl.BlockSpec((g_pad, bf), lambda f, n, off: (0, f)),
        ),
        compiler_params=pltpu.CompilerParams(
            dimension_semantics=("parallel", "arbitrary"),
            vmem_limit_bytes=_VMEM_LIMIT,
        ),
    )(offsets, h)


# ---------------------------------------------------------------------------
# Fused head: fc1 + ReLU + fc2  (M = num_graphs is tiny -> single block)
# ---------------------------------------------------------------------------
def _head_kernel(p_ref, w1_ref, b1_ref, w2_ref, b2_ref, o_ref):
    z = jnp.dot(p_ref[...], w1_ref[...], preferred_element_type=jnp.float32) + b1_ref[...]
    z = jnp.maximum(z, 0.0).astype(jnp.bfloat16)
    # F.dropout is identity in eval mode; omitted.
    o_ref[...] = (
        jnp.dot(z, w2_ref[...], preferred_element_type=jnp.float32) + b2_ref[...]
    )


def fc_head(p, w1, b1, w2, b2):
    g_pad = p.shape[0]
    dout = w2.shape[1]
    vmem = pl.BlockSpec(memory_space=pltpu.MemorySpace.VMEM)
    return pl.pallas_call(
        _head_kernel,
        out_shape=jax.ShapeDtypeStruct((g_pad, dout), jnp.float32),
        in_specs=[vmem] * 5,
        out_specs=vmem,
        compiler_params=pltpu.CompilerParams(vmem_limit_bytes=_VMEM_LIMIT),
    )(
        p,                                        # already bf16 from the pool
        w1,
        b1.reshape(1, -1).astype(jnp.float32),
        w2,
        b2.reshape(1, -1).astype(jnp.float32),
    )


# ---------------------------------------------------------------------------
# Plain-JAX glue: dense normalized adjacency, params, padding, forward
# ---------------------------------------------------------------------------
def build_a_hat(edge_index, num_nodes):
    src, dst = edge_index[0], edge_index[1]
    a = jnp.zeros((num_nodes, num_nodes), jnp.float32).at[dst, src].set(1.0)
    a = a + jnp.eye(num_nodes, dtype=jnp.float32)             # add self loops
    deg = jnp.sum(a, axis=1)
    d_inv_sqrt = jnp.where(deg > 0, 1.0 / jnp.sqrt(deg), 0.0)
    return d_inv_sqrt[:, None] * a * d_inv_sqrt[None, :]


def init_params(key, input_dim, output_dim):
    dims = [
        ("w1", (input_dim, input_dim)), ("b1", (input_dim,)),
        ("w2", (input_dim, input_dim * 2)), ("b2", (input_dim * 2,)),
        ("w3", (input_dim * 2, input_dim * 4)), ("b3", (input_dim * 4,)),
        ("wf1", (input_dim * 4, 1024)), ("bf1", (1024,)),
        ("wf2", (1024, output_dim)), ("bf2", (output_dim,)),
    ]
    params = {}
    keys = jax.random.split(key, len(dims))
    for (name, shape), k in zip(dims, keys):
        params[name] = 0.1 * jax.random.normal(k, shape, dtype=jnp.float32)
    return params


def pad_and_cast(params, x, a_hat, batch, num_graphs):
    """Pad lane dims to x128, N to x128 (x512 for big graphs), G to x16; bf16 matmul operands."""
    n = x.shape[0]
    c1 = params["w1"].shape[0]
    c2 = params["w2"].shape[1]
    c3 = params["w3"].shape[1]
    dout = params["wf2"].shape[1]
    n_pad = _round_up(n, 512) if n >= 2048 else _round_up(n, 128)
    c1p, c2p, c3p, dp = (_round_up(c, 128) for c in (c1, c2, c3, dout))
    g_pad = _round_up(num_graphs, 16)
    bf16 = jnp.bfloat16

    pp = {
        "w1": _pad2(params["w1"], c1p, c1p).astype(bf16),
        "b1": _pad1(params["b1"], c1p).astype(jnp.float32),
        "w2": _pad2(params["w2"], c1p, c2p).astype(bf16),
        "b2": _pad1(params["b2"], c2p).astype(jnp.float32),
        "w3": _pad2(params["w3"], c2p, c3p).astype(bf16),
        "b3": _pad1(params["b3"], c3p).astype(jnp.float32),
        "wf1": _pad2(params["wf1"], c3p, 1024).astype(bf16),
        "bf1": params["bf1"].astype(jnp.float32),
        "wf2": _pad2(params["wf2"], 1024, dp).astype(bf16),
        "bf2": _pad1(params["bf2"], dp).astype(jnp.float32),
    }
    x_p = _pad2(x, n_pad, c1p).astype(bf16)
    a_p = _pad2(a_hat, n_pad, n_pad).astype(bf16)
    # Per-graph node start offsets (batch sorted, PyG convention); offsets[G] == N so padded
    # nodes never enter the pool.
    offsets = jnp.searchsorted(
        batch, jnp.arange(num_graphs + 1, dtype=jnp.int32)
    ).astype(jnp.int32)
    return pp, x_p, a_p, offsets, g_pad


def gcn_forward(pp, x_p, a_p, offsets, num_graphs, g_pad, output_dim):
    n_pad = a_p.shape[0]
    bm = _pick_block(n_pad, _BM_C, min_tiles=_MIN_PAR_TILES)
    bk = _pick_block(n_pad, _BK_C)
    block_nz = compute_block_nz(a_p, bm, bk)                 # once, reused by all 3 layers
    h = gcn_layer(a_p, x_p, pp["w1"], pp["b1"], block_nz, bm, bk)   # conv1 + relu
    h = gcn_layer(a_p, h, pp["w2"], pp["b2"], block_nz, bm, bk)     # conv2 + relu
    h = gcn_layer(a_p, h, pp["w3"], pp["b3"], block_nz, bm, bk)     # conv3 + relu
    p = global_max_pool(h, offsets, num_graphs, g_pad)              # [G_pad, C3p] bf16
    out = fc_head(p, pp["wf1"], pp["bf1"], pp["wf2"], pp["bf2"])    # fc1+relu+fc2 fused
    return out[:num_graphs, :output_dim]


def gcn_forward_ref(pp, x_p, a_p, offsets, num_graphs, output_dim):
    """Plain-JAX reference mirroring the same (a_hat@x)@W bf16 / f32-accum policy."""
    f32 = jnp.float32

    def layer(h, w, b):
        ax = jnp.dot(a_p, h, preferred_element_type=f32).astype(jnp.bfloat16)
        o = jnp.dot(ax, w, preferred_element_type=f32) + b
        return jnp.maximum(o, 0.0).astype(jnp.bfloat16)

    h = layer(x_p, pp["w1"], pp["b1"])
    h = layer(h, pp["w2"], pp["b2"])
    h = layer(h, pp["w3"], pp["b3"])
    row = jnp.arange(h.shape[0])[:, None]
    neg_inf = jnp.array(-jnp.inf, h.dtype)
    pooled = jnp.stack(
        [
            jnp.max(
                jnp.where((row >= offsets[g]) & (row < offsets[g + 1]), h, neg_inf),
                axis=0,
            )
            for g in range(num_graphs)
        ],
        axis=0,
    )
    z = jnp.maximum(
        jnp.dot(pooled, pp["wf1"], preferred_element_type=f32) + pp["bf1"], 0.0
    )
    out = (
        jnp.dot(z.astype(jnp.bfloat16), pp["wf2"], preferred_element_type=f32)
        + pp["bf2"]
    )
    return out[:, :output_dim]


if __name__ == "__main__":
    # Small synthetic graph batch: 2 graphs x 8 nodes = 16 nodes, input_dim=8, output_dim=16.
    N, G = 16, 2
    INPUT_DIM, OUTPUT_DIM = 8, 16

    key = jax.random.PRNGKey(0)
    k_x, k_p = jax.random.split(key)
    x = jax.random.normal(k_x, (N, INPUT_DIM), dtype=jnp.float32)

    # Chain edges inside each graph, both directions (no cross-graph edges); batch is sorted.
    src, dst = [], []
    for base in (0, 8):
        for i in range(7):
            src += [base + i, base + i + 1]
            dst += [base + i + 1, base + i]
    edge_index = jnp.array([src, dst], dtype=jnp.int32)        # [2, 28]
    batch = jnp.array([0] * 8 + [1] * 8, dtype=jnp.int32)      # [16]

    a_hat = build_a_hat(edge_index, N)
    params = init_params(k_p, INPUT_DIM, OUTPUT_DIM)

    pp, x_p, a_p, offsets, g_pad = pad_and_cast(params, x, a_hat, batch, G)

    out = gcn_forward(pp, x_p, a_p, offsets, G, g_pad, OUTPUT_DIM)
    out = jax.block_until_ready(out)

    ref = gcn_forward_ref(pp, x_p, a_p, offsets, G, OUTPUT_DIM)
    assert out.shape == (G, OUTPUT_DIM)
    assert jnp.allclose(out, ref, rtol=1e-2, atol=1e-2), "mismatch vs JAX reference"

    print("KERNEL_OK")
</pallas_src>

<mosaic_0001>
module attributes {stable_mosaic.version = 11 : i64} {
  func.func @_gcn_conv_kernel(%arg0: i32, %arg1: i32, %arg2: memref<1xi32, #tpu.memory_space<smem>>, %arg3: memref<128x128xbf16, #tpu.memory_space<vmem>>, %arg4: memref<128x128xbf16, #tpu.memory_space<vmem>>, %arg5: memref<128x128xbf16, #tpu.memory_space<vmem>>, %arg6: memref<1x128xf32, #tpu.memory_space<vmem>>, %arg7: memref<128x128xbf16, #tpu.memory_space<vmem>>, %arg8: memref<128x128xf32, #tpu.memory_space<vmem>>) attributes {dimension_semantics = [#tpu.dimension_semantics<parallel>, #tpu.dimension_semantics<arbitrary>], iteration_bounds = array<i64: 1, 1>, scalar_prefetch = 1 : i64, scratch_operands = 1 : i64, tpu.core_type = #tpu.core_type<tc>, window_params = [{transform_indices = @transform_0, window_bounds = array<i64: 128, 128>}, {transform_indices = @transform_1, window_bounds = array<i64: 128, 128>}, {pipeline_mode = #tpu.pipeline_mode<synchronous>, transform_indices = @transform_2, window_bounds = array<i64: 128, 128>}, {pipeline_mode = #tpu.pipeline_mode<synchronous>, transform_indices = @transform_3, window_bounds = array<i64: 1, 128>}, {transform_indices = @transform_4, window_bounds = array<i64: 128, 128>}]} {
    %c0_i32 = arith.constant 0 : i32
    %0 = arith.cmpi eq, %arg1, %c0_i32 : i32
    %1 = arith.extui %0 : i1 to i32
    %c0_i32_0 = arith.constant 0 : i32
    %2 = arith.cmpi ne, %1, %c0_i32_0 : i32
    scf.if %2 {
      %cst = arith.constant 0.000000e+00 : f32
      %13 = vector.broadcast %cst : f32 to vector<128x128xf32>
      %c0 = arith.constant 0 : index
      %c0_5 = arith.constant 0 : index
      %14 = vector.load %arg8[%c0, %c0_5] : memref<128x128xf32, #tpu.memory_space<vmem>>, vector<128x128xf32>
      tpu.vector_store %arg8[%c0, %c0_5], %13 {strides = array<i32>} : memref<128x128xf32, #tpu.memory_space<vmem>>, vector<128x128xf32>,
    } else {
    }
    %c1_i32 = arith.constant 1 : i32
    %3 = arith.muli %arg0, %c1_i32 : i32
    %4 = arith.addi %3, %arg1 : i32
    %5 = arith.index_cast %4 : i32 to index
    %6 = memref.load %arg2[%5] : memref<1xi32, #tpu.memory_space<smem>>
    %c0_i32_1 = arith.constant 0 : i32
    %7 = arith.cmpi ne, %6, %c0_i32_1 : i32
    %8 = arith.extui %7 : i1 to i32
    %c0_i32_2 = arith.constant 0 : i32
    %9 = arith.cmpi ne, %8, %c0_i32_2 : i32
    scf.if %9 {
      %c0 = arith.constant 0 : index
      %c0_5 = arith.constant 0 : index
      %13 = vector.load %arg8[%c0, %c0_5] : memref<128x128xf32, #tpu.memory_space<vmem>>, vector<128x128xf32>
      %c0_6 = arith.constant 0 : index
      %c0_7 = arith.constant 0 : index
      %14 = vector.load %arg3[%c0_6, %c0_7] : memref<128x128xbf16, #tpu.memory_space<vmem>>, vector<128x128xbf16>
      %c0_8 = arith.constant 0 : index
      %c0_9 = arith.constant 0 : index
      %15 = vector.load %arg4[%c0_8, %c0_9] : memref<128x128xbf16, #tpu.memory_space<vmem>>, vector<128x128xbf16>
      %cst = arith.constant dense<0.000000e+00> : vector<128x128xf32>
      %16 = tpu.matmul %14, %15, %cst {dimension_numbers = #tpu.dot_dimension_numbers<[1], [0], [0], [1], [0, 0, 1, 1], [], []>} : vector<128x128xbf16>, vector<128x128xbf16>, vector<128x128xf32> -> vector<128x128xf32>
      %17 = arith.addf %13, %16 : vector<128x128xf32>
      %c0_10 = arith.constant 0 : index
      %c0_11 = arith.constant 0 : index
      %18 = vector.load %arg8[%c0_10, %c0_11] : memref<128x128xf32, #tpu.memory_space<vmem>>, vector<128x128xf32>
      tpu.vector_store %arg8[%c0_10, %c0_11], %17 {strides = array<i32>} : memref<128x128xf32, #tpu.memory_space<vmem>>, vector<128x128xf32>,
    } else {
    }
    %c0_i32_3 = arith.constant 0 : i32
    %10 = arith.cmpi eq, %arg1, %c0_i32_3 : i32
    %11 = arith.extui %10 : i1 to i32
    %c0_i32_4 = arith.constant 0 : i32
    %12 = arith.cmpi ne, %11, %c0_i32_4 : i32
    scf.if %12 {
      %c0 = arith.constant 0 : index
      %c0_5 = arith.constant 0 : index
      %13 = vector.load %arg8[%c0, %c0_5] : memref<128x128xf32, #tpu.memory_space<vmem>>, vector<128x128xf32>
      %14 = arith.truncf %13 : vector<128x128xf32> to vector<128x128xbf16>
      %c0_6 = arith.constant 0 : index
      %c0_7 = arith.constant 0 : index
      %15 = vector.load %arg5[%c0_6, %c0_7] : memref<128x128xbf16, #tpu.memory_space<vmem>>, vector<128x128xbf16>
      %cst = arith.constant dense<0.000000e+00> : vector<128x128xf32>
      %16 = tpu.matmul %14, %15, %cst {dimension_numbers = #tpu.dot_dimension_numbers<[1], [0], [0], [1], [0, 0, 1, 1], [], []>} : vector<128x128xbf16>, vector<128x128xbf16>, vector<128x128xf32> -> vector<128x128xf32>
      %c0_8 = arith.constant 0 : index
      %c0_9 = arith.constant 0 : index
      %17 = vector.load %arg6[%c0_8, %c0_9] : memref<1x128xf32, #tpu.memory_space<vmem>>, vector<1x128xf32>
      %18 = vector.broadcast %17 : vector<1x128xf32> to vector<128x128xf32>
      %19 = arith.addf %16, %18 : vector<128x128xf32>
      %cst_10 = arith.constant 0.000000e+00 : f32
      %20 = vector.broadcast %cst_10 : f32 to vector<128x128xf32>
      %21 = arith.maximumf %19, %20 : vector<128x128xf32>
      %22 = arith.truncf %21 : vector<128x128xf32> to vector<128x128xbf16>
      %c0_11 = arith.constant 0 : index
      %c0_12 = arith.constant 0 : index
      %23 = vector.load %arg7[%c0_11, %c0_12] : memref<128x128xbf16, #tpu.memory_space<vmem>>, vector<128x128xbf16>
      tpu.vector_store %arg7[%c0_11, %c0_12], %22 {strides = array<i32>} : memref<128x128xbf16, #tpu.memory_space<vmem>>, vector<128x128xbf16>,
    } else {
    }
    return
  }
  func.func @transform_0(%arg0: i32, %arg1: i32, %arg2: memref<1xi32, #tpu.memory_space<smem>>) -> (i32, i32) {
    %c0_i32 = arith.constant 0 : i32
    return %arg0, %arg1 : i32, i32
  }
  func.func @transform_1(%arg0: i32, %arg1: i32, %arg2: memref<1xi32, #tpu.memory_space<smem>>) -> (i32, i32) {
    %c0_i32 = arith.constant 0 : i32
    %c0_i32_0 = arith.constant 0 : i32
    return %arg1, %c0_i32 : i32, i32
  }
  func.func @transform_2(%arg0: i32, %arg1: i32, %arg2: memref<1xi32, #tpu.memory_space<smem>>) -> (i32, i32) {
    %c0_i32 = arith.constant 0 : i32
    %c0_i32_0 = arith.constant 0 : i32
    %c0_i32_1 = arith.constant 0 : i32
    return %c0_i32, %c0_i32_0 : i32, i32
  }
  func.func @transform_3(%arg0: i32, %arg1: i32, %arg2: memref<1xi32, #tpu.memory_space<smem>>) -> (i32, i32) {
    %c0_i32 = arith.constant 0 : i32
    %c0_i32_0 = arith.constant 0 : i32
    %c0_i32_1 = arith.constant 0 : i32
    return %c0_i32, %c0_i32_0 : i32, i32
  }
  func.func @transform_4(%arg0: i32, %arg1: i32, %arg2: memref<1xi32, #tpu.memory_space<smem>>) -> (i32, i32) {
    %c0_i32 = arith.constant 0 : i32
    %c0_i32_0 = arith.constant 0 : i32
    return %arg0, %c0_i32 : i32, i32
  }
}

</mosaic_0001>

<llo_original>
// kernel: tpu_custom_call.1
$region0: #{tpu_custom_call.1}
  #allocation0 [shape = 'u32[]', space=smem, size = 0x4, offset = 0x4, fixed_abs, tag = 'smem constant byte address 0x4 - core index']
  #allocation1 [shape = 'u32[72,128]{1,0:T(1,128)}', space=vmem, size = 0x9000, scoped, tag = 'internal scratch']
  #allocation2 [shape = 'f32[128,128]{1,0:T(8,128)}', space=vmem, size = 0x10000, scoped, tag = 'scratch operand']
  #allocation3 [shape = 's32[1]{0}', space=sflag, size = 0x4, scoped, tag = 'scoped memory for tpu_custom_call.1']
  #allocation4 [shape = 's32[1]{0:T(128)S(6)}', space=smem, size = 0x200, scoped, tag = 'prefetched SMEM operand 0']
  %s0 = inlined_call_operand.<no memory space> [shape: s32[1], index: 0, kind: input, shape index: {}]
  %s1 = inlined_call_operand.hbm [shape: bf16[128,128], index: 1, kind: input, shape index: {}]
  %s2 = inlined_call_operand.hbm [shape: bf16[128,128], index: 2, kind: input, shape index: {}]
  %s3 = inlined_call_operand.hbm [shape: bf16[128,128], index: 3, kind: input, shape index: {}]
  %s4 = inlined_call_operand.vmem [shape: f32[1,128], index: 4, kind: input, shape index: {}]
  %s5 = inlined_call_operand.hbm [shape: bf16[128,128], index: 5, kind: output, shape index: {}]
  %s6 = sld [smem:[#allocation0]]
  $region50: #{tpu_custom_call.1} parent=0
    _
  %s8 = ssub.s32 1, %s6
  %s9 = scalar_select 0, %s8, %s6
  %10 = sst [smem:[#allocation4]] %s0
  $region1: #{tpu_custom_call.1} parent=0
    #allocation5 [shape = 'u8[32768]{0}', space=vmem, size = 0x8000, scoped, tag = 'input window, operand 1, single buffered']
    #allocation6 [shape = 's32[1]{0}', space=sflag, size = 0x4, scoped, tag = 'scoped memory for tpu_custom_call.1']
    #allocation7 [shape = 's32[1]{0}', space=sflag, size = 0x4, scoped, tag = 'scoped memory for tpu_custom_call.1']
    #allocation8 [shape = 'u8[32768]{0}', space=vmem, size = 0x8000, scoped, tag = 'input window, operand 2, single buffered']
    #allocation9 [shape = 's32[1]{0}', space=sflag, size = 0x4, scoped, tag = 'scoped memory for tpu_custom_call.1']
    #allocation10 [shape = 'u8[32768]{0}', space=vmem, size = 0x8000, scoped, tag = 'input window, operand 3, single buffered']
    #allocation11 [shape = 'u8[32768]{0}', space=vmem, size = 0x8000, scoped, tag = 'output window, operand 0, single buffered']
    %11 = vsyncpa [#allocation6], 0
    %12 = vsyncpa [#allocation9], 0
    %13 = vsyncpa [#allocation7], 0
    // Predicated region
    $region2: #{tpu_custom_call.1} parent=1 // pred_check
      _
    $region3: #{tpu_custom_call.1} parent=1 // pred_check_branch
      %15 = sbr.rel (0) target = $region5
    $region4: #{tpu_custom_call.1} parent=1 // pred_region
      %17 = vsyncadd [#allocation6], 0
      %s18 = sshll.u32 %s1, 4
      %s19 = int_to_ptr.hbm [resolvable:$true] %s18
      %s20 = sshll.u32 [#allocation5], 4
      %s21 = int_to_ptr.vmem [resolvable:$true] %s20
      %26 = dma.hbm_to_vmem [thread:$0]  %s19, 1024, %s21, [#allocation6], 64, 64, 4
    $region5: #{tpu_custom_call.1} parent=1 // pred_fallthru
      _
    // Predicated region
    $region6: #{tpu_custom_call.1} parent=1 // pred_check
      _
    $region7: #{tpu_custom_call.1} parent=1 // pred_check_branch
      %28 = sbr.rel (0) target = $region9
    $region8: #{tpu_custom_call.1} parent=1 // pred_region
      %30 = vsyncadd [#allocation9], 0
      %s31 = sshll.u32 %s2, 4
      %s32 = int_to_ptr.hbm [resolvable:$true] %s31
      %s33 = sshll.u32 [#allocation8], 4
      %s34 = int_to_ptr.vmem [resolvable:$true] %s33
      %39 = dma.hbm_to_vmem [thread:$0]  %s32, 1024, %s34, [#allocation9], 64, 64, 4
    $region9: #{tpu_custom_call.1} parent=1 // pred_fallthru
      _
    // Predicated region
    $region10: #{tpu_custom_call.1} parent=1 // pred_check
      _
    $region11: #{tpu_custom_call.1} parent=1 // pred_check_branch
      %41 = sbr.rel (0) target = $region13
    $region12: #{tpu_custom_call.1} parent=1 // pred_region
      %43 = vsyncadd [#allocation9], 0
      %s44 = sshll.u32 %s3, 4
      %s45 = int_to_ptr.hbm [resolvable:$true] %s44
      %s46 = sshll.u32 [#allocation10], 4
      %s47 = int_to_ptr.vmem [resolvable:$true] %s46
      %52 = dma.hbm_to_vmem [thread:$0]  %s45, 1024, %s47, [#allocation9], 64, 64, 4
    $region13: #{tpu_custom_call.1} parent=1 // pred_fallthru
      _
    // Predicated region
    $region14: #{tpu_custom_call.1} parent=1 // pred_check
      _
    $region15: #{tpu_custom_call.1} parent=1 // pred_check_branch
      %54 = sbr.rel (0) target = $region17
    $region16: #{tpu_custom_call.1} parent=1 // pred_region
      _
    $region17: #{tpu_custom_call.1} parent=1 // pred_fallthru
      _
    // Predicated region
    $region18: #{tpu_custom_call.1} parent=1 // pred_check
      _
    $region19: #{tpu_custom_call.1} parent=1 // pred_check_branch
      %56 = sbr.rel (0) target = $region21
    $region20: #{tpu_custom_call.1} parent=1 // pred_region
      %58 = dma.done [#allocation6], 1024
    $region21: #{tpu_custom_call.1} parent=1 // pred_fallthru
      _
    // Predicated region
    $region22: #{tpu_custom_call.1} parent=1 // pred_check
      _
    $region23: #{tpu_custom_call.1} parent=1 // pred_check_branch
      %60 = sbr.rel (0) target = $region25
    $region24: #{tpu_custom_call.1} parent=1 // pred_region
      %62 = dma.done [#allocation9], 1024
    $region25: #{tpu_custom_call.1} parent=1 // pred_fallthru
      _
    // Predicated region
    $region26: #{tpu_custom_call.1} parent=1 // pred_check
      _
    $region27: #{tpu_custom_call.1} parent=1 // pred_check_branch
      %64 = sbr.rel (0) target = $region29
    $region28: #{tpu_custom_call.1} parent=1 // pred_region
      %66 = dma.done [#allocation9], 1024
    $region29: #{tpu_custom_call.1} parent=1 // pred_fallthru
      _
    %p67 = scmp.eq.s32.totalorder 0, 0
    // Predicated region
    $region30: #{tpu_custom_call.1} parent=1 // pred_check
      %p68 = pneg %p67
    $region31: #{tpu_custom_call.1} parent=1 // pred_check_branch
      %70 = sbr.rel (%p68) target = $region33
    $region32: #{tpu_custom_call.1} parent=1 // pred_region
      %71 = vst [vmem:[#allocation2] sm:$0xff] 0.0
      %72 = vst [vmem:[#allocation2 + $0x8] sm:$0xff] 0.0
      %73 = vst [vmem:[#allocation2 + $0x10] sm:$0xff] 0.0
      %74 = vst [vmem:[#allocation2 + $0x18] sm:$0xff] 0.0
      %75 = vst [vmem:[#allocation2 + $0x20] sm:$0xff] 0.0
      %76 = vst [vmem:[#allocation2 + $0x28] sm:$0xff] 0.0
      %77 = vst [vmem:[#allocation2 + $0x30] sm:$0xff] 0.0
      %78 = vst [vmem:[#allocation2 + $0x38] sm:$0xff] 0.0
      %79 = vst [vmem:[#allocation2 + $0x40] sm:$0xff] 0.0
      %80 = vst [vmem:[#allocation2 + $0x48] sm:$0xff] 0.0
      %81 = vst [vmem:[#allocation2 + $0x50] sm:$0xff] 0.0
      %82 = vst [vmem:[#allocation2 + $0x58] sm:$0xff] 0.0
      %83 = vst [vmem:[#allocation2 + $0x60] sm:$0xff] 0.0
      %84 = vst [vmem:[#allocation2 + $0x68] sm:$0xff] 0.0
      %85 = vst [vmem:[#allocation2 + $0x70] sm:$0xff] 0.0
      %86 = vst [vmem:[#allocation2 + $0x78] sm:$0xff] 0.0
    $region33: #{tpu_custom_call.1} parent=1 // pred_fallthru
      _
    %s87 = sadd.s32 0, 0
    %s88 = sld [smem:[#allocation4 + %s87]]
    %p89 = scmp.ne.s32.totalorder %s88, 0
    // Predicated region
    $region34: #{tpu_custom_call.1} parent=1 // pred_check
      %p90 = pneg %p89
    $region35: #{tpu_custom_call.1} parent=1 // pred_check_branch
      %92 = sbr.rel (%p90) target = $region37
    $region36: #{tpu_custom_call.1} parent=1 // pred_region
      %v93 = vld [vmem:[#allocation2] sm:$0xff]
      %v94 = vld [vmem:[#allocation2 + $0x8] sm:$0xff]
      %v95 = vld [vmem:[#allocation2 + $0x10] sm:$0xff]
      %v96 = vld [vmem:[#allocation2 + $0x18] sm:$0xff]
      %v97 = vld [vmem:[#allocation2 + $0x20] sm:$0xff]
      %v98 = vld [vmem:[#allocation2 + $0x28] sm:$0xff]
      %v99 = vld [vmem:[#allocation2 + $0x30] sm:$0xff]
      %v100 = vld [vmem:[#allocation2 + $0x38] sm:$0xff]
      %v101 = vld [vmem:[#allocation2 + $0x40] sm:$0xff]
      %v102 = vld [vmem:[#allocation2 + $0x48] sm:$0xff]
      %v103 = vld [vmem:[#allocation2 + $0x50] sm:$0xff]
      %v104 = vld [vmem:[#allocation2 + $0x58] sm:$0xff]
      %v105 = vld [vmem:[#allocation2 + $0x60] sm:$0xff]
      %v106 = vld [vmem:[#allocation2 + $0x68] sm:$0xff]
      %v107 = vld [vmem:[#allocation2 + $0x70] sm:$0xff]
      %v108 = vld [vmem:[#allocation2 + $0x78] sm:$0xff]
      %v109 = vld [vmem:[#allocation5] sm:$0xf]
      %v110 = vld [vmem:[#allocation5 + $0x4] sm:$0xf]
      %v111 = vld [vmem:[#allocation5 + $0x8] sm:$0xf]
      %v112 = vld [vmem:[#allocation5 + $0xc] sm:$0xf]
      %v113 = vld [vmem:[#allocation5 + $0x10] sm:$0xf]
      %v114 = vld [vmem:[#allocation5 + $0x14] sm:$0xf]
      %v115 = vld [vmem:[#allocation5 + $0x18] sm:$0xf]
      %v116 = vld [vmem:[#allocation5 + $0x1c] sm:$0xf]
      %v117 = vld [vmem:[#allocation5 + $0x20] sm:$0xf]
      %v118 = vld [vmem:[#allocation5 + $0x24] sm:$0xf]
      %v119 = vld [vmem:[#allocation5 + $0x28] sm:$0xf]
      %v120 = vld [vmem:[#allocation5 + $0x2c] sm:$0xf]
      %v121 = vld [vmem:[#allocation5 + $0x30] sm:$0xf]
      %v122 = vld [vmem:[#allocation5 + $0x34] sm:$0xf]
      %v123 = vld [vmem:[#allocation5 + $0x38] sm:$0xf]
      %v124 = vld [vmem:[#allocation5 + $0x3c] sm:$0xf]
      %v125 = vld [vmem:[#allocation8] sm:$0xf]
      %v126 = vld [vmem:[#allocation8 + $0x4] sm:$0xf]
      %v127 = vld [vmem:[#allocation8 + $0x8] sm:$0xf]
      %v128 = vld [vmem:[#allocation8 + $0xc] sm:$0xf]
      %v129 = vld [vmem:[#allocation8 + $0x10] sm:$0xf]
      %v130 = vld [vmem:[#allocation8 + $0x14] sm:$0xf]
      %v131 = vld [vmem:[#allocation8 + $0x18] sm:$0xf]
      %v132 = vld [vmem:[#allocation8 + $0x1c] sm:$0xf]
      %v133 = vld [vmem:[#allocation8 + $0x20] sm:$0xf]
      %v134 = vld [vmem:[#allocation8 + $0x24] sm:$0xf]
      %v135 = vld [vmem:[#allocation8 + $0x28] sm:$0xf]
      %v136 = vld [vmem:[#allocation8 + $0x2c] sm:$0xf]
      %v137 = vld [vmem:[#allocation8 + $0x30] sm:$0xf]
      %v138 = vld [vmem:[#allocation8 + $0x34] sm:$0xf]
      %v139 = vld [vmem:[#allocation8 + $0x38] sm:$0xf]
      %v140 = vld [vmem:[#allocation8 + $0x3c] sm:$0xf]
      %v157 = vunpack.c.l.b16 %v109
      %v158 = vunpack.c.l.b16 %v110
      %v159 = vunpack.c.l.b16 %v111
      %v160 = vunpack.c.l.b16 %v112
      %v161 = vunpack.c.l.b16 %v113
      %v162 = vunpack.c.l.b16 %v114
      %v163 = vunpack.c.l.b16 %v115
      %v164 = vunpack.c.l.b16 %v116
      %v165 = vunpack.c.l.b16 %v117
      %v166 = vunpack.c.l.b16 %v118
      %v167 = vunpack.c.l.b16 %v119
      %v168 = vunpack.c.l.b16 %v120
      %v169 = vunpack.c.l.b16 %v121
      %v170 = vunpack.c.l.b16 %v122
      %v171 = vunpack.c.l.b16 %v123
      %v172 = vunpack.c.l.b16 %v124
      %v173 = vpack.c.b16 %v158, %v157
      %v174 = vpack.c.b16 %v160, %v159
      %v175 = vpack.c.b16 %v162, %v161
      %v176 = vpack.c.b16 %v164, %v163
      %v177 = vpack.c.b16 %v166, %v165
      %v178 = vpack.c.b16 %v168, %v167
      %v179 = vpack.c.b16 %v170, %v169
      %v180 = vpack.c.b16 %v172, %v171
      %v205 = vunpack.c.l.b16 %v125
      %v206 = vunpack.c.l.b16 %v126
      %v207 = vunpack.c.l.b16 %v127
      %v208 = vunpack.c.l.b16 %v128
      %v209 = vunpack.c.l.b16 %v129
      %v210 = vunpack.c.l.b16 %v130
      %v211 = vunpack.c.l.b16 %v131
      %v212 = vunpack.c.l.b16 %v132
      %v213 = vunpack.c.l.b16 %v133
      %v214 = vunpack.c.l.b16 %v134
      %v215 = vunpack.c.l.b16 %v135
      %v216 = vunpack.c.l.b16 %v136
      %v217 = vunpack.c.l.b16 %v137
      %v218 = vunpack.c.l.b16 %v138
      %v219 = vunpack.c.l.b16 %v139
      %v220 = vunpack.c.l.b16 %v140
      %v221 = vpack.c.b16 %v206, %v205
      %v222 = vpack.c.b16 %v208, %v207
      %v223 = vpack.c.b16 %v210, %v209
      %v224 = vpack.c.b16 %v212, %v211
      %v225 = vpack.c.b16 %v214, %v213
      %v226 = vpack.c.b16 %v216, %v215
      %v227 = vpack.c.b16 %v218, %v217
      %v228 = vpack.c.b16 %v220, %v219
      %237 = vmatpush.bf16.msra.mxu0 %v228
      %238 = vmatpush.bf16.msra.mxu0 %v227
      %239 = vmatpush.bf16.msra.mxu0 %v226
      %240 = vmatpush.bf16.msra.mxu0 %v225
      %241 = vmatpush.bf16.msra.mxu0 %v224
      %242 = vmatpush.bf16.msra.mxu0 %v223
      %243 = vmatpush.bf16.msra.mxu0 %v222
      %244 = vmatpush.bf16.msra.mxu0 %v221
      %245 = vmatmul.bf16.gmra.mxu0 %v173
      %v246 = vpop.f32.mrf.mxu0
      %v247 = vadd.f32 0.0, %v246
      %v248 = vpop.f32.mrf.mxu0
      %v249 = vadd.f32 0.0, %v248
      %250 = vmatmul.bf16.gmra.mxu0 %v174
      %v251 = vpop.f32.mrf.mxu0
      %v252 = vadd.f32 0.0, %v251
      %v253 = vpop.f32.mrf.mxu0
      %v254 = vadd.f32 0.0, %v253
      %255 = vmatmul.bf16.gmra.mxu0 %v175
      %v256 = vpop.f32.mrf.mxu0
      %v257 = vadd.f32 0.0, %v256
      %v258 = vpop.f32.mrf.mxu0
      %v259 = vadd.f32 0.0, %v258
      %260 = vmatmul.bf16.gmra.mxu0 %v176
      %v261 = vpop.f32.mrf.mxu0
      %v262 = vadd.f32 0.0, %v261
      %v263 = vpop.f32.mrf.mxu0
      %v264 = vadd.f32 0.0, %v263
      %265 = vmatmul.bf16.gmra.mxu0 %v177
      %v266 = vpop.f32.mrf.mxu0
      %v267 = vadd.f32 0.0, %v266
      %v268 = vpop.f32.mrf.mxu0
      %v269 = vadd.f32 0.0, %v268
      %270 = vmatmul.bf16.gmra.mxu0 %v178
      %v271 = vpop.f32.mrf.mxu0
      %v272 = vadd.f32 0.0, %v271
      %v273 = vpop.f32.mrf.mxu0
      %v274 = vadd.f32 0.0, %v273
      %275 = vmatmul.bf16.gmra.mxu0 %v179
      %v276 = vpop.f32.mrf.mxu0
      %v277 = vadd.f32 0.0, %v276
      %v278 = vpop.f32.mrf.mxu0
      %v279 = vadd.f32 0.0, %v278
      %280 = vmatmul.bf16.gmra.mxu0 %v180
      %v281 = vpop.f32.mrf.mxu0
      %v282 = vadd.f32 0.0, %v281
      %v283 = vpop.f32.mrf.mxu0
      %v284 = vadd.f32 0.0, %v283
      %285 = vdwg.mxu0
      %v286 = vadd.f32 %v93, %v247
      %v287 = vadd.f32 %v94, %v249
      %v288 = vadd.f32 %v95, %v252
      %v289 = vadd.f32 %v96, %v254
      %v290 = vadd.f32 %v97, %v257
      %v291 = vadd.f32 %v98, %v259
      %v292 = vadd.f32 %v99, %v262
      %v293 = vadd.f32 %v100, %v264
      %v294 = vadd.f32 %v101, %v267
      %v295 = vadd.f32 %v102, %v269
      %v296 = vadd.f32 %v103, %v272
      %v297 = vadd.f32 %v104, %v274
      %v298 = vadd.f32 %v105, %v277
      %v299 = vadd.f32 %v106, %v279
      %v300 = vadd.f32 %v107, %v282
      %v301 = vadd.f32 %v108, %v284
      %302 = vst [vmem:[#allocation2] sm:$0xff] %v286
      %303 = vst [vmem:[#allocation2 + $0x8] sm:$0xff] %v287
      %304 = vst [vmem:[#allocation2 + $0x10] sm:$0xff] %v288
      %305 = vst [vmem:[#allocation2 + $0x18] sm:$0xff] %v289
      %306 = vst [vmem:[#allocation2 + $0x20] sm:$0xff] %v290
      %307 = vst [vmem:[#allocation2 + $0x28] sm:$0xff] %v291
      %308 = vst [vmem:[#allocation2 + $0x30] sm:$0xff] %v292
      %309 = vst [vmem:[#allocation2 + $0x38] sm:$0xff] %v293
      %310 = vst [vmem:[#allocation2 + $0x40] sm:$0xff] %v294
      %311 = vst [vmem:[#allocation2 + $0x48] sm:$0xff] %v295
      %312 = vst [vmem:[#allocation2 + $0x50] sm:$0xff] %v296
      %313 = vst [vmem:[#allocation2 + $0x58] sm:$0xff] %v297
      %314 = vst [vmem:[#allocation2 + $0x60] sm:$0xff] %v298
      %315 = vst [vmem:[#allocation2 + $0x68] sm:$0xff] %v299
      %316 = vst [vmem:[#allocation2 + $0x70] sm:$0xff] %v300
      %317 = vst [vmem:[#allocation2 + $0x78] sm:$0xff] %v301
    $region37: #{tpu_custom_call.1} parent=1 // pred_fallthru
      _
    // Predicated region
    $region38: #{tpu_custom_call.1} parent=1 // pred_check
      %p318 = pneg %p67
    $region39: #{tpu_custom_call.1} parent=1 // pred_check_branch
      %320 = sbr.rel (%p318) target = $region41
    $region40: #{tpu_custom_call.1} parent=1 // pred_region
      %v321 = vld [vmem:[#allocation2] sm:$0xff]
      %v322 = vld [vmem:[#allocation2 + $0x8] sm:$0xff]
      %v323 = vld [vmem:[#allocation2 + $0x10] sm:$0xff]
      %v324 = vld [vmem:[#allocation2 + $0x18] sm:$0xff]
      %v325 = vld [vmem:[#allocation2 + $0x20] sm:$0xff]
      %v326 = vld [vmem:[#allocation2 + $0x28] sm:$0xff]
      %v327 = vld [vmem:[#allocation2 + $0x30] sm:$0xff]
      %v328 = vld [vmem:[#allocation2 + $0x38] sm:$0xff]
      %v329 = vld [vmem:[#allocation2 + $0x40] sm:$0xff]
      %v330 = vld [vmem:[#allocation2 + $0x48] sm:$0xff]
      %v331 = vld [vmem:[#allocation2 + $0x50] sm:$0xff]
      %v332 = vld [vmem:[#allocation2 + $0x58] sm:$0xff]
      %v333 = vld [vmem:[#allocation2 + $0x60] sm:$0xff]
      %v334 = vld [vmem:[#allocation2 + $0x68] sm:$0xff]
      %v335 = vld [vmem:[#allocation2 + $0x70] sm:$0xff]
      %v336 = vld [vmem:[#allocation2 + $0x78] sm:$0xff]
      %v337 = vpack.c.bf16 %v322, %v321
      %v338 = vpack.c.bf16 %v324, %v323
      %v339 = vpack.c.bf16 %v326, %v325
      %v340 = vpack.c.bf16 %v328, %v327
      %v341 = vpack.c.bf16 %v330, %v329
      %v342 = vpack.c.bf16 %v332, %v331
      %v343 = vpack.c.bf16 %v334, %v333
      %v344 = vpack.c.bf16 %v336, %v335
      %v345 = vld [vmem:[#allocation10] sm:$0xf]
      %v346 = vld [vmem:[#allocation10 + $0x4] sm:$0xf]
      %v347 = vld [vmem:[#allocation10 + $0x8] sm:$0xf]
      %v348 = vld [vmem:[#allocation10 + $0xc] sm:$0xf]
      %v349 = vld [vmem:[#allocation10 + $0x10] sm:$0xf]
      %v350 = vld [vmem:[#allocation10 + $0x14] sm:$0xf]
      %v351 = vld [vmem:[#allocation10 + $0x18] sm:$0xf]
      %v352 = vld [vmem:[#allocation10 + $0x1c] sm:$0xf]
      %v353 = vld [vmem:[#allocation10 + $0x20] sm:$0xf]
      %v354 = vld [vmem:[#allocation10 + $0x24] sm:$0xf]
      %v355 = vld [vmem:[#allocation10 + $0x28] sm:$0xf]
      %v356 = vld [vmem:[#allocation10 + $0x2c] sm:$0xf]
      %v357 = vld [vmem:[#allocation10 + $0x30] sm:$0xf]
      %v358 = vld [vmem:[#allocation10 + $0x34] sm:$0xf]
      %v359 = vld [vmem:[#allocation10 + $0x38] sm:$0xf]
      %v360 = vld [vmem:[#allocation10 + $0x3c] sm:$0xf]
      %v361 = vld [vmem:[%s4] sm:$0x1]
      %v363 = vperm.slane %v361, 0
      %v381 = vunpack.c.l.b16 %v345
      %v382 = vunpack.c.l.b16 %v346
      %v383 = vunpack.c.l.b16 %v347
      %v384 = vunpack.c.l.b16 %v348
      %v385 = vunpack.c.l.b16 %v349
      %v386 = vunpack.c.l.b16 %v350
      %v387 = vunpack.c.l.b16 %v351
      %v388 = vunpack.c.l.b16 %v352
      %v389 = vunpack.c.l.b16 %v353
      %v390 = vunpack.c.l.b16 %v354
      %v391 = vunpack.c.l.b16 %v355
      %v392 = vunpack.c.l.b16 %v356
      %v393 = vunpack.c.l.b16 %v357
      %v394 = vunpack.c.l.b16 %v358
      %v395 = vunpack.c.l.b16 %v359
      %v396 = vunpack.c.l.b16 %v360
      %v397 = vpack.c.b16 %v382, %v381
      %v398 = vpack.c.b16 %v384, %v383
      %v399 = vpack.c.b16 %v386, %v385
      %v400 = vpack.c.b16 %v388, %v387
      %v401 = vpack.c.b16 %v390, %v389
      %v402 = vpack.c.b16 %v392, %v391
      %v403 = vpack.c.b16 %v394, %v393
      %v404 = vpack.c.b16 %v396, %v395
      %413 = vmatpush.bf16.msra.mxu0 %v404
      %414 = vmatpush.bf16.msra.mxu0 %v403
      %415 = vmatpush.bf16.msra.mxu0 %v402
      %416 = vmatpush.bf16.msra.mxu0 %v401
      %417 = vmatpush.bf16.msra.mxu0 %v400
      %418 = vmatpush.bf16.msra.mxu0 %v399
      %419 = vmatpush.bf16.msra.mxu0 %v398
      %420 = vmatpush.bf16.msra.mxu0 %v397
      %421 = vmatmul.bf16.gmra.mxu0 %v337
      %v422 = vpop.f32.mrf.mxu0
      %v423 = vadd.f32 %v363, %v422
      %v424 = vpop.f32.mrf.mxu0
      %v425 = vadd.f32 %v363, %v424
      %426 = vmatmul.bf16.gmra.mxu0 %v338
      %v427 = vpop.f32.mrf.mxu0
      %v428 = vadd.f32 %v363, %v427
      %v429 = vpop.f32.mrf.mxu0
      %v430 = vadd.f32 %v363, %v429
      %431 = vmatmul.bf16.gmra.mxu0 %v339
      %v432 = vpop.f32.mrf.mxu0
      %v433 = vadd.f32 %v363, %v432
      %v434 = vpop.f32.mrf.mxu0
      %v435 = vadd.f32 %v363, %v434
      %436 = vmatmul.bf16.gmra.mxu0 %v340
      %v437 = vpop.f32.mrf.mxu0
      %v438 = vadd.f32 %v363, %v437
      %v439 = vpop.f32.mrf.mxu0
      %v440 = vadd.f32 %v363, %v439
      %441 = vmatmul.bf16.gmra.mxu0 %v341
      %v442 = vpop.f32.mrf.mxu0
      %v443 = vadd.f32 %v363, %v442
      %v444 = vpop.f32.mrf.mxu0
      %v445 = vadd.f32 %v363, %v444
      %446 = vmatmul.bf16.gmra.mxu0 %v342
      %v447 = vpop.f32.mrf.mxu0
      %v448 = vadd.f32 %v363, %v447
      %v449 = vpop.f32.mrf.mxu0
      %v450 = vadd.f32 %v363, %v449
      %451 = vmatmul.bf16.gmra.mxu0 %v343
      %v452 = vpop.f32.mrf.mxu0
      %v453 = vadd.f32 %v363, %v452
      %v454 = vpop.f32.mrf.mxu0
      %v455 = vadd.f32 %v363, %v454
      %456 = vmatmul.bf16.gmra.mxu0 %v344
      %v457 = vpop.f32.mrf.mxu0
      %v458 = vadd.f32 %v363, %v457
      %v459 = vpop.f32.mrf.mxu0
      %v460 = vadd.f32 %v363, %v459
      %461 = vdwg.mxu0
      %v462 = vmax.f32 %v423, 0.0
      %v463 = vmax.f32 %v425, 0.0
      %v464 = vmax.f32 %v428, 0.0
      %v465 = vmax.f32 %v430, 0.0
      %v466 = vmax.f32 %v433, 0.0
      %v467 = vmax.f32 %v435, 0.0
      %v468 = vmax.f32 %v438, 0.0
      %v469 = vmax.f32 %v440, 0.0
      %v470 = vmax.f32 %v443, 0.0
      %v471 = vmax.f32 %v445, 0.0
      %v472 = vmax.f32 %v448, 0.0
      %v473 = vmax.f32 %v450, 0.0
      %v474 = vmax.f32 %v453, 0.0
      %v475 = vmax.f32 %v455, 0.0
      %v476 = vmax.f32 %v458, 0.0
      %v477 = vmax.f32 %v460, 0.0
      %v478 = vpack.c.bf16 %v462, %v462
      %v479 = vpack.c.bf16 %v463, %v463
      %v480 = vpack.c.bf16 %v464, %v464
      %v481 = vpack.c.bf16 %v465, %v465
      %v482 = vpack.c.bf16 %v466, %v466
      %v483 = vpack.c.bf16 %v467, %v467
      %v484 = vpack.c.bf16 %v468, %v468
      %v485 = vpack.c.bf16 %v469, %v469
      %v486 = vpack.c.bf16 %v470, %v470
      %v487 = vpack.c.bf16 %v471, %v471
      %v488 = vpack.c.bf16 %v472, %v472
      %v489 = vpack.c.bf16 %v473, %v473
      %v490 = vpack.c.bf16 %v474, %v474
      %v491 = vpack.c.bf16 %v475, %v475
      %v492 = vpack.c.bf16 %v476, %v476
      %v493 = vpack.c.bf16 %v477, %v477
      %494 = vst [vmem:[#allocation11] sm:$0xf] %v478
      %495 = vst [vmem:[#allocation11 + $0x4] sm:$0xf] %v479
      %496 = vst [vmem:[#allocation11 + $0x8] sm:$0xf] %v480
      %497 = vst [vmem:[#allocation11 + $0xc] sm:$0xf] %v481
      %498 = vst [vmem:[#allocation11 + $0x10] sm:$0xf] %v482
      %499 = vst [vmem:[#allocation11 + $0x14] sm:$0xf] %v483
      %500 = vst [vmem:[#allocation11 + $0x18] sm:$0xf] %v484
      %501 = vst [vmem:[#allocation11 + $0x1c] sm:$0xf] %v485
      %502 = vst [vmem:[#allocation11 + $0x20] sm:$0xf] %v486
      %503 = vst [vmem:[#allocation11 + $0x24] sm:$0xf] %v487
      %504 = vst [vmem:[#allocation11 + $0x28] sm:$0xf] %v488
      %505 = vst [vmem:[#allocation11 + $0x2c] sm:$0xf] %v489
      %506 = vst [vmem:[#allocation11 + $0x30] sm:$0xf] %v490
      %507 = vst [vmem:[#allocation11 + $0x34] sm:$0xf] %v491
      %508 = vst [vmem:[#allocation11 + $0x38] sm:$0xf] %v492
      %509 = vst [vmem:[#allocation11 + $0x3c] sm:$0xf] %v493
    $region41: #{tpu_custom_call.1} parent=1 // pred_fallthru
      _
    // Predicated region
    $region42: #{tpu_custom_call.1} parent=1 // pred_check
      _
    $region43: #{tpu_custom_call.1} parent=1 // pred_check_branch
      %511 = sbr.rel (0) target = $region45
    $region44: #{tpu_custom_call.1} parent=1 // pred_region
      %513 = vsyncadd [#allocation7], 0
      %s514 = sshll.u32 [#allocation11], 4
      %s515 = int_to_ptr.vmem [resolvable:$true] %s514
      %s516 = sshll.u32 %s5, 4
      %s517 = int_to_ptr.hbm [resolvable:$true] %s516
      %522 = dma.vmem_to_hbm [thread:$0]  %s515, 1024, %s517, [#allocation7], 64, 64, 4
    $region45: #{tpu_custom_call.1} parent=1 // pred_fallthru
      _
    // Predicated region
    $region46: #{tpu_custom_call.1} parent=1 // pred_check
      _
    $region47: #{tpu_custom_call.1} parent=1 // pred_check_branch
      %524 = sbr.rel (0) target = $region49
    $region48: #{tpu_custom_call.1} parent=1 // pred_region
      %526 = dma.done [#allocation7], 1024
    $region49: #{tpu_custom_call.1} parent=1 // pred_fallthru
      _
    %527 = vsyncpa [#allocation6], 1
    %528 = vsyncpa [#allocation9], 1
    %529 = vsyncpa [#allocation7], 1

</llo_original>
